<compile_context>
chip_gen: v5e
topology: v5e:2x2
jax: 0.10.0
libtpu: 0.0.40
codegen_flags: <defaults>
</compile_context>

<pallas_src>
import functools
import math

import jax
import jax.numpy as jnp
from jax.experimental import pallas as pl
from jax.experimental.pallas import tpu as pltpu


def _round_up(x, m):
    return ((x + m - 1) // m) * m


def _cdiv(a, b):
    return (a + b - 1) // b


def _vmem_limit_bytes():
    """~80% of physical VMEM: ~100 MiB on 128 MiB chips (v5e/v6e), ~51 MiB on v7x."""
    cap = 64 << 20  # conservative fallback (v7x per-TensorCore capacity)
    try:
        cap = int(pltpu.get_tpu_info().vmem_capacity_bytes)
    except Exception:
        pass
    return int(cap * 0.8)


def _pad2d(a, rows, cols, dtype):
    a = a.astype(dtype)
    r, c = a.shape
    if (r, c) == (rows, cols):
        return a  # already aligned: no extra HBM round-trip
    return jnp.zeros((rows, cols), dtype).at[:r, :c].set(a)


def _gelu_f32(h):
    # NewGELUActivation: 0.5*x*(1 + tanh(sqrt(2/pi)*(x + 0.044715*x^3))), f32 math.
    # tanh runs on the EUP (its own VLIW slot); the polynomial stays minimal on the VPU.
    c = 0.7978845608028654  # sqrt(2/pi)
    return 0.5 * h * (1.0 + jnp.tanh(c * h * (1.0 + 0.044715 * h * h)))


def _mlp_kernel_out_acc(precision, x_ref, w1_ref, b1_ref, w2_ref, b2_ref, o_ref):
    """float32 output: accumulate directly into the resident output block."""
    k = pl.program_id(1)

    @pl.when(k == 0)
    def _init():
        o_ref[...] = jnp.zeros_like(o_ref)

    h = jnp.dot(x_ref[...], w1_ref[...], precision=precision,
                preferred_element_type=jnp.float32) + b1_ref[...]
    g = _gelu_f32(h)
    o_ref[...] += jnp.dot(g.astype(w2_ref.dtype), w2_ref[...], precision=precision,
                          preferred_element_type=jnp.float32)

    @pl.when(k == pl.num_programs(1) - 1)
    def _finalize():
        # dropout: eval-mode (inference) => identity
        # TODO(synk): training-mode dropout (pltpu.prng_random_bits mask) not implemented.
        o_ref[...] += b2_ref[...]


def _mlp_kernel_scratch_acc(precision, x_ref, w1_ref, b1_ref, w2_ref, b2_ref,
                            o_ref, acc_ref):
    """non-f32 output: accumulate in an f32 VMEM scratch, cast on the last k step."""
    k = pl.program_id(1)

    @pl.when(k == 0)
    def _init():
        acc_ref[...] = jnp.zeros_like(acc_ref)

    h = jnp.dot(x_ref[...], w1_ref[...], precision=precision,
                preferred_element_type=jnp.float32) + b1_ref[...]
    g = _gelu_f32(h)
    acc_ref[...] += jnp.dot(g.astype(w2_ref.dtype), w2_ref[...], precision=precision,
                            preferred_element_type=jnp.float32)

    @pl.when(k == pl.num_programs(1) - 1)
    def _finalize():
        # dropout: eval-mode (inference) => identity
        o_ref[...] = (acc_ref[...] + b2_ref[...]).astype(o_ref.dtype)


def prepare_mlp_params(w1, b1, w2, b2, *, compute_dtype=jnp.bfloat16,
                       tm_hint=256, ti=None, weight_buffers=2, vmem_limit=None):
    """Pad/cast the weights ONCE (call at load time, reuse across forward calls).

    w1: [H, I], b1: [I], w2: [I, H], b2: [H] (in->out layout, transpose of PyTorch).
    Picks the intermediate-dim tile `ti` (128-aligned) as large as the VMEM budget
    allows and pads I so that `ti` divides it exactly.
    """
    H, I = w1.shape
    cdt = jnp.dtype(compute_dtype)
    in_isz = cdt.itemsize
    f32 = jnp.float32

    Hp = _round_up(H, 128)
    Ip = _round_up(I, 128)

    if vmem_limit is None:
        vmem_limit = _vmem_limit_bytes()
    budget = vmem_limit - (2 << 20)  # headroom for compiler-internal scratch

    # ti-independent VMEM at the reference row tile: double-buffered x tile plus
    # out-tile/accumulator (tm*Hp*8 bytes covers either f32-out or bf16-out+f32-acc).
    tm_ref = _round_up(tm_hint, 8)
    fixed = 2 * tm_ref * Hp * in_isz + tm_ref * Hp * 8 + 2 * Hp * 4
    per_ti = 2 * weight_buffers * Hp * in_isz + 2 * 4  # w1 column + w2 row (+ b1)
    ti_fit = max((budget - fixed) // per_ti, 128)
    ti_fit = max((ti_fit // 128) * 128, 128)
    if ti is None:
        ti_eff = min(Ip, ti_fit, 2048)
    else:
        ti_eff = min(Ip, _round_up(ti, 128), ti_fit)
    ti_eff = max(ti_eff, 128)

    Ipp = _round_up(Ip, ti_eff)  # ti_eff divides the padded intermediate dim exactly

    return dict(
        w1=_pad2d(w1, Hp, Ipp, cdt),
        b1=_pad2d(b1.astype(f32).reshape(1, I), 1, Ipp, f32),
        w2=_pad2d(w2, Ipp, Hp, cdt),
        b2=_pad2d(b2.astype(f32).reshape(1, H), 1, Hp, f32),
        H=H, I=I, Hp=Hp, Ipp=Ipp, ti=ti_eff,
        compute_dtype=cdt, weight_buffers=weight_buffers, vmem_limit=int(vmem_limit),
    )


def mlp_pallas(x, params, *, tm=256, precision=None):
    """MLP forward: x [..., H] -> [..., H], using weights prepared by prepare_mlp_params.

    precision: pass jax.lax.Precision.HIGHEST for true-f32 MXU matmuls (costs extra
    MXU passes); default lets the compiler pick (bf16-class for the bf16 path).
    """
    *lead, H = x.shape
    if H != params["H"]:
        raise ValueError(f"hidden size mismatch: x has {H}, params expect {params['H']}")

    Hp, Ipp, ti = params["Hp"], params["Ipp"], params["ti"]
    cdt = params["compute_dtype"]
    in_isz = jnp.dtype(cdt).itemsize
    out_dtype = x.dtype
    out_isz = jnp.dtype(out_dtype).itemsize
    use_out_acc = out_dtype == jnp.float32   # accumulate straight into o_ref
    wbuf = params["weight_buffers"]
    vmem_limit = params["vmem_limit"]
    budget = vmem_limit - (2 << 20)

    M = 1
    for d in lead:
        M *= d
    M8 = _round_up(max(M, 1), 8)
    min_tiles = 2 if M8 >= 16 else 1  # keep both v7x TensorCores busy

    # Row tile: start from the hint, halve until the working set fits the budget.
    tm_c = max(8, min(_round_up(tm, 8), M8))
    while True:
        n = max(_cdiv(M8, tm_c), min_tiles)
        tm_eff = _round_up(_cdiv(M8, n), 8)
        work = (2 * tm_eff * Hp * in_isz                     # x tile (double-buffered)
                + 2 * tm_eff * Hp * out_isz                  # out tile
                + (0 if use_out_acc else tm_eff * Hp * 4)    # f32 scratch (non-f32 out)
                + wbuf * Hp * ti * in_isz                    # w1 I-slice
                + wbuf * ti * Hp * in_isz                    # w2 I-slice
                + 2 * (ti + Hp) * 4)                         # biases
        if work <= budget or tm_eff <= 8:
            break
        tm_c = max(8, _round_up(tm_c // 2, 8))

    Mp = n * tm_eff
    nk = Ipp // ti
    grid = (n, nk)

    # Flatten + pad x (skipped when already lane/row aligned and dtype matches).
    x2d = _pad2d(x.reshape(M, H), Mp, Hp, cdt)

    kernel = functools.partial(
        _mlp_kernel_out_acc if use_out_acc else _mlp_kernel_scratch_acc, precision)
    scratch = [] if use_out_acc else [pltpu.VMEM((tm_eff, Hp), jnp.float32)]

    if wbuf != 2:
        # Deeper buffering to hide streamed-weight DMA (v5e/v6e headroom only).
        w1_spec = pl.BlockSpec((Hp, ti), lambda i, k: (0, k), pipeline_mode=pl.Buffered(wbuf))
        w2_spec = pl.BlockSpec((ti, Hp), lambda i, k: (k, 0), pipeline_mode=pl.Buffered(wbuf))
    else:
        w1_spec = pl.BlockSpec((Hp, ti), lambda i, k: (0, k))
        w2_spec = pl.BlockSpec((ti, Hp), lambda i, k: (k, 0))

    cost = pl.CostEstimate(
        flops=4 * Mp * Hp * Ipp,            # two matmuls: 2*M*H*I each
        transcendentals=Mp * Ipp,           # tanh per intermediate element
        bytes_accessed=(x2d.size * in_isz
                        + params["w1"].size * in_isz
                        + params["w2"].size * in_isz
                        + (Ipp + Hp) * 4
                        + Mp * Hp * out_isz),
    )

    out2d = pl.pallas_call(
        kernel,
        out_shape=jax.ShapeDtypeStruct((Mp, Hp), out_dtype),
        grid_spec=pltpu.PrefetchScalarGridSpec(
            num_scalar_prefetch=0,
            grid=grid,                                             # (row tiles, I-reduction)
            in_specs=[
                pl.BlockSpec((tm_eff, Hp), lambda i, k: (i, 0)),   # x row tile
                w1_spec,                                           # w1 I-slice (streamed)
                pl.BlockSpec((1, ti), lambda i, k: (0, k)),        # b1 I-slice
                w2_spec,                                           # w2 I-slice (streamed)
                pl.BlockSpec((1, Hp), lambda i, k: (0, 0)),        # b2
            ],
            out_specs=pl.BlockSpec((tm_eff, Hp), lambda i, k: (i, 0)),
            scratch_shapes=scratch,
        ),
        compiler_params=pltpu.CompilerParams(
            dimension_semantics=("parallel", "arbitrary"),
            vmem_limit_bytes=int(vmem_limit)),
        cost_estimate=cost,
    )(x2d, params["w1"], params["b1"], params["w2"], params["b2"])

    return out2d[:M, :H].reshape(*lead, H)


# ----------------------------- test utilities -------------------------------

def _torch_linear_init(key, fan_in, fan_out, dtype=jnp.float32):
    # Mimic nn.Linear default init: U(-1/sqrt(fan_in), 1/sqrt(fan_in))
    kw, kb = jax.random.split(key)
    bound = 1.0 / math.sqrt(fan_in)
    w = jax.random.uniform(kw, (fan_in, fan_out), dtype, -bound, bound)
    b = jax.random.uniform(kb, (fan_out,), dtype, -bound, bound)
    return w, b


def _reference_mlp(x, w1, b1, w2, b2):
    h = x @ w1 + b1
    c = math.sqrt(2.0 / math.pi)
    g = 0.5 * h * (1.0 + jnp.tanh(c * (h + 0.044715 * h ** 3)))
    return g @ w2 + b2


if __name__ == "__main__":
    # config: hidden_size=32, intermediate_size=64, hidden_dropout_prob=0.0 (eval)
    B, S, H, I = 2, 8, 32, 64

    key = jax.random.PRNGKey(0)
    kx, k1, k2 = jax.random.split(key, 3)

    x = jax.random.normal(kx, (B, S, H), jnp.float32)
    w1, b1 = _torch_linear_init(k1, H, I)
    w2, b2 = _torch_linear_init(k2, I, H)

    ref = _reference_mlp(x, w1, b1, w2, b2)

    # f32 compute path (accumulates directly into the f32 output block).
    params_f32 = prepare_mlp_params(w1, b1, w2, b2, compute_dtype=jnp.float32)
    out = jax.block_until_ready(mlp_pallas(x, params_f32))
    assert out.shape == (B, S, H)
    assert jnp.allclose(out, ref, atol=1e-5, rtol=1e-5), "f32 mismatch vs reference"

    # Default perf path: bf16 MXU inputs, f32 accumulation + f32 GELU, f32 output.
    params_bf16 = prepare_mlp_params(w1, b1, w2, b2)  # compute_dtype defaults to bf16
    out_bf16 = jax.block_until_ready(mlp_pallas(x, params_bf16))
    assert jnp.allclose(out_bf16, ref, atol=5e-2, rtol=5e-2), "bf16 mismatch vs reference"

    # bf16 output path (exercises the f32-scratch accumulator + final cast).
    out_b16o = jax.block_until_ready(mlp_pallas(x.astype(jnp.bfloat16), params_bf16))
    assert out_b16o.dtype == jnp.bfloat16
    assert jnp.allclose(out_b16o.astype(jnp.float32), ref, atol=5e-2, rtol=5e-2), \
        "bf16-out mismatch vs reference"

    print("KERNEL_OK")
</pallas_src>

<mosaic_0001>
module attributes {stable_mosaic.version = 11 : i64} {
  func.func @_mlp_kernel_out_acc(%arg0: i32, %arg1: i32, %arg2: memref<8x128xf32, #tpu.memory_space<vmem>>, %arg3: memref<128x128xf32, #tpu.memory_space<vmem>>, %arg4: memref<1x128xf32, #tpu.memory_space<vmem>>, %arg5: memref<128x128xf32, #tpu.memory_space<vmem>>, %arg6: memref<1x128xf32, #tpu.memory_space<vmem>>, %arg7: memref<8x128xf32, #tpu.memory_space<vmem>>) attributes {dimension_semantics = [#tpu.dimension_semantics<parallel>, #tpu.dimension_semantics<arbitrary>], iteration_bounds = array<i64: 2, 1>, scalar_prefetch = 0 : i64, scratch_operands = 0 : i64, tpu.core_type = #tpu.core_type<tc>, window_params = [{transform_indices = @transform_0, window_bounds = array<i64: 8, 128>}, {transform_indices = @transform_1, window_bounds = array<i64: 128, 128>}, {transform_indices = @transform_2, window_bounds = array<i64: 1, 128>}, {transform_indices = @transform_3, window_bounds = array<i64: 128, 128>}, {pipeline_mode = #tpu.pipeline_mode<synchronous>, transform_indices = @transform_4, window_bounds = array<i64: 1, 128>}, {transform_indices = @transform_5, window_bounds = array<i64: 8, 128>}]} {
    %c0_i32 = arith.constant 0 : i32
    %0 = arith.cmpi eq, %arg1, %c0_i32 : i32
    %1 = arith.extui %0 : i1 to i32
    %c0_i32_0 = arith.constant 0 : i32
    %2 = arith.cmpi ne, %1, %c0_i32_0 : i32
    scf.if %2 {
      %cst_20 = arith.constant 0.000000e+00 : f32
      %31 = vector.broadcast %cst_20 : f32 to vector<8x128xf32>
      %c0_21 = arith.constant 0 : index
      %c0_22 = arith.constant 0 : index
      %32 = vector.load %arg7[%c0_21, %c0_22] : memref<8x128xf32, #tpu.memory_space<vmem>>, vector<8x128xf32>
      tpu.vector_store %arg7[%c0_21, %c0_22], %31 {strides = array<i32>} : memref<8x128xf32, #tpu.memory_space<vmem>>, vector<8x128xf32>,
    } else {
    }
    %c0 = arith.constant 0 : index
    %c0_1 = arith.constant 0 : index
    %3 = vector.load %arg2[%c0, %c0_1] : memref<8x128xf32, #tpu.memory_space<vmem>>, vector<8x128xf32>
    %c0_2 = arith.constant 0 : index
    %c0_3 = arith.constant 0 : index
    %4 = vector.load %arg3[%c0_2, %c0_3] : memref<128x128xf32, #tpu.memory_space<vmem>>, vector<128x128xf32>
    %cst = arith.constant dense<0.000000e+00> : vector<8x128xf32>
    %5 = tpu.matmul %3, %4, %cst {dimension_numbers = #tpu.dot_dimension_numbers<[1], [0], [0], [1], [0, 0, 1, 1], [], []>} : vector<8x128xf32>, vector<128x128xf32>, vector<8x128xf32> -> vector<8x128xf32>
    %c0_4 = arith.constant 0 : index
    %c0_5 = arith.constant 0 : index
    %6 = vector.load %arg4[%c0_4, %c0_5] : memref<1x128xf32, #tpu.memory_space<vmem>>, vector<1x128xf32>
    %7 = vector.broadcast %6 : vector<1x128xf32> to vector<8x128xf32>
    %8 = arith.addf %5, %7 : vector<8x128xf32>
    %cst_6 = arith.constant 5.000000e-01 : f32
    %9 = vector.broadcast %cst_6 : f32 to vector<8x128xf32>
    %10 = arith.mulf %9, %8 : vector<8x128xf32>
    %cst_7 = arith.constant 0.797884583 : f32
    %11 = vector.broadcast %cst_7 : f32 to vector<8x128xf32>
    %12 = arith.mulf %11, %8 : vector<8x128xf32>
    %cst_8 = arith.constant 4.471500e-02 : f32
    %13 = vector.broadcast %cst_8 : f32 to vector<8x128xf32>
    %14 = arith.mulf %13, %8 : vector<8x128xf32>
    %15 = arith.mulf %14, %8 : vector<8x128xf32>
    %cst_9 = arith.constant 1.000000e+00 : f32
    %16 = vector.broadcast %cst_9 : f32 to vector<8x128xf32>
    %17 = arith.addf %16, %15 : vector<8x128xf32>
    %18 = arith.mulf %12, %17 : vector<8x128xf32>
    %19 = math.tanh %18 : vector<8x128xf32>
    %cst_10 = arith.constant 1.000000e+00 : f32
    %20 = vector.broadcast %cst_10 : f32 to vector<8x128xf32>
    %21 = arith.addf %20, %19 : vector<8x128xf32>
    %22 = arith.mulf %10, %21 : vector<8x128xf32>
    %c0_11 = arith.constant 0 : index
    %c0_12 = arith.constant 0 : index
    %23 = vector.load %arg7[%c0_11, %c0_12] : memref<8x128xf32, #tpu.memory_space<vmem>>, vector<8x128xf32>
    %c0_13 = arith.constant 0 : index
    %c0_14 = arith.constant 0 : index
    %24 = vector.load %arg5[%c0_13, %c0_14] : memref<128x128xf32, #tpu.memory_space<vmem>>, vector<128x128xf32>
    %cst_15 = arith.constant dense<0.000000e+00> : vector<8x128xf32>
    %25 = tpu.matmul %22, %24, %cst_15 {dimension_numbers = #tpu.dot_dimension_numbers<[1], [0], [0], [1], [0, 0, 1, 1], [], []>} : vector<8x128xf32>, vector<128x128xf32>, vector<8x128xf32> -> vector<8x128xf32>
    %26 = arith.addf %23, %25 : vector<8x128xf32>
    %c0_16 = arith.constant 0 : index
    %c0_17 = arith.constant 0 : index
    %27 = vector.load %arg7[%c0_16, %c0_17] : memref<8x128xf32, #tpu.memory_space<vmem>>, vector<8x128xf32>
    tpu.vector_store %arg7[%c0_16, %c0_17], %26 {strides = array<i32>} : memref<8x128xf32, #tpu.memory_space<vmem>>, vector<8x128xf32>,
    %c0_i32_18 = arith.constant 0 : i32
    %28 = arith.cmpi eq, %arg1, %c0_i32_18 : i32
    %29 = arith.extui %28 : i1 to i32
    %c0_i32_19 = arith.constant 0 : i32
    %30 = arith.cmpi ne, %29, %c0_i32_19 : i32
    scf.if %30 {
      %c0_20 = arith.constant 0 : index
      %c0_21 = arith.constant 0 : index
      %31 = vector.load %arg7[%c0_20, %c0_21] : memref<8x128xf32, #tpu.memory_space<vmem>>, vector<8x128xf32>
      %c0_22 = arith.constant 0 : index
      %c0_23 = arith.constant 0 : index
      %32 = vector.load %arg6[%c0_22, %c0_23] : memref<1x128xf32, #tpu.memory_space<vmem>>, vector<1x128xf32>
      %33 = vector.broadcast %32 : vector<1x128xf32> to vector<8x128xf32>
      %34 = arith.addf %31, %33 : vector<8x128xf32>
      %c0_24 = arith.constant 0 : index
      %c0_25 = arith.constant 0 : index
      %35 = vector.load %arg7[%c0_24, %c0_25] : memref<8x128xf32, #tpu.memory_space<vmem>>, vector<8x128xf32>
      tpu.vector_store %arg7[%c0_24, %c0_25], %34 {strides = array<i32>} : memref<8x128xf32, #tpu.memory_space<vmem>>, vector<8x128xf32>,
    } else {
    }
    return
  }
  func.func @transform_0(%arg0: i32, %arg1: i32) -> (i32, i32) {
    %c0_i32 = arith.constant 0 : i32
    %c0_i32_0 = arith.constant 0 : i32
    return %arg0, %c0_i32 : i32, i32
  }
  func.func @transform_1(%arg0: i32, %arg1: i32) -> (i32, i32) {
    %c0_i32 = arith.constant 0 : i32
    %c0_i32_0 = arith.constant 0 : i32
    return %c0_i32, %arg1 : i32, i32
  }
  func.func @transform_2(%arg0: i32, %arg1: i32) -> (i32, i32) {
    %c0_i32 = arith.constant 0 : i32
    %c0_i32_0 = arith.constant 0 : i32
    return %c0_i32, %arg1 : i32, i32
  }
  func.func @transform_3(%arg0: i32, %arg1: i32) -> (i32, i32) {
    %c0_i32 = arith.constant 0 : i32
    %c0_i32_0 = arith.constant 0 : i32
    return %arg1, %c0_i32 : i32, i32
  }
  func.func @transform_4(%arg0: i32, %arg1: i32) -> (i32, i32) {
    %c0_i32 = arith.constant 0 : i32
    %c0_i32_0 = arith.constant 0 : i32
    %c0_i32_1 = arith.constant 0 : i32
    return %c0_i32, %c0_i32_0 : i32, i32
  }
  func.func @transform_5(%arg0: i32, %arg1: i32) -> (i32, i32) {
    %c0_i32 = arith.constant 0 : i32
    %c0_i32_0 = arith.constant 0 : i32
    return %arg0, %c0_i32 : i32, i32
  }
}

</mosaic_0001>

<llo_original>
// kernel: tpu_custom_call.1
$region0: #{tpu_custom_call.1}
  #allocation0 [shape = 'u32[]', space=smem, size = 0x4, offset = 0x4, fixed_abs, tag = 'smem constant byte address 0x4 - core index']
  #allocation1 [shape = 'u32[72,128]{1,0:T(1,128)}', space=vmem, size = 0x9000, scoped, tag = 'internal scratch']
  %s0 = inlined_call_operand.hbm [shape: f32[16,128], index: 0, kind: input, shape index: {}]
  %s1 = inlined_call_operand.hbm [shape: f32[128,128], index: 1, kind: input, shape index: {}]
  %s2 = inlined_call_operand.vmem [shape: f32[1,128], index: 2, kind: input, shape index: {}]
  %s3 = inlined_call_operand.hbm [shape: f32[128,128], index: 3, kind: input, shape index: {}]
  %s4 = inlined_call_operand.vmem [shape: f32[1,128], index: 4, kind: input, shape index: {}]
  %s5 = inlined_call_operand.hbm [shape: f32[16,128], index: 5, kind: output, shape index: {}]
  %s6 = sld [smem:[#allocation0]]
  $region73: #{tpu_custom_call.1} parent=0
    _
  %s8 = ssub.s32 1, %s6
  %s9 = scalar_select 0, %s8, %s6
  $region1: #{tpu_custom_call.1} parent=0
    #allocation2 [shape = 'u8[8192]{0}', space=vmem, size = 0x2000, scoped, tag = 'input window, operand 0']
    #allocation3 [shape = 's32[2]{0}', space=sflag, size = 0x8, scoped, tag = 'scoped memory for tpu_custom_call.1']
    #allocation4 [shape = 's32[2]{0}', space=sflag, size = 0x8, scoped, tag = 'scoped memory for tpu_custom_call.1']
    #allocation5 [shape = 'u8[65536]{0}', space=vmem, size = 0x10000, scoped, tag = 'input window, operand 1, single buffered']
    #allocation6 [shape = 's32[1]{0}', space=sflag, size = 0x4, scoped, tag = 'scoped memory for tpu_custom_call.1']
    #allocation7 [shape = 'u8[65536]{0}', space=vmem, size = 0x10000, scoped, tag = 'input window, operand 3, single buffered']
    #allocation8 [shape = 'u8[8192]{0}', space=vmem, size = 0x2000, scoped, tag = 'output window, operand 0']
    %10 = vsyncpa [#allocation3], 0
    %s11 = scalar_lea.sflag [#allocation3], 1
    %12 = vsyncpa %s11, 0
    %13 = vsyncpa [#allocation6], 0
    %14 = vsyncpa [#allocation4], 0
    %s15 = scalar_lea.sflag [#allocation4], 1
    %16 = vsyncpa %s15, 0
    loop: start=0, step=1, limit=4
    $region2: #{tpu_custom_call.1} parent=1 // loop_pre_header
      _
    $region3: #{tpu_custom_call.1} parent=1 // loop_header
      %s18 = sphi 0, %s22
      %p19 = scmp.ge.s32.totalorder %s18, 4
      %s25 = sphi 0, %s37
      %s26 = sphi 0, %s33
      %s27 = sphi 0, %s25
      %s28 = sphi 0, %s26
      %s29 = sphi 0, %s27
      %s30 = sphi 0, %s28
      %s40 = sphi 0, %s42
      %s43 = sphi 0, %s40
      %s44 = sphi 0, %s43
      %s60 = sphi 0, %s44
      %s66 = sphi 0, %s68
      %s69 = sphi 0, %s66
      %s70 = sphi 0, %s69
      %s86 = sphi 0, %s70
      %s92 = sphi 0, %s94
      %s95 = sphi 0, %s92
      %s96 = sphi 0, %s95
      %s112 = sphi 0, %s96
      %s118 = sphi 0, %s120
      %s121 = sphi 0, %s118
      %s122 = sphi 0, %s121
      %s138 = sphi 0, %s122
      %s142 = sphi 0, %s142
      %s144 = sphi 0, %s142
      %s145 = sphi 0, %s144
      %s159 = sphi 0, %s145
      %s165 = sphi 0, %s167
      %s168 = sphi 0, %s165
      %s169 = sphi 0, %s168
      %s185 = sphi 0, %s169
    $region4: #{tpu_custom_call.1} parent=1 // loop_header_branch
      %21 = sbr.rel (%p19) target = $region8
    $region5: #{tpu_custom_call.1} parent=1 // loop_body
      %s23 = ssub.s32 %s18, 1
      %s24 = ssub.s32 %s18, 2
      %s31 = sadd.s32 1, %s26
      %p32 = scmp.ge.s32.totalorder %s31, 1
      %s33 = scalar_select %p32, 0, %s31
      %s34 = sadd.s32 1, %s25
      %s35 = scalar_select %p32, %s34, %s25
      %p36 = scmp.ge.s32.totalorder %s35, 2
      %s37 = scalar_select %p36, 0, %s35
      %s38 = ssub.s32 %s25, %s37
      %p39 = scmp.eq.s32.totalorder %s38, 0
      %s41 = sadd.s32 %s40, 1
      %s42 = scalar_select %p39, %s40, %s41
      %p45 = pneg %p39
      %p46 = scmp.eq.s32.totalorder %s18, 1
      %p47 = por %p45, %p46
      %p48 = scmp.ne.s32.totalorder %s40, %s43
      %p49 = scmp.eq.s32.totalorder %s18, 0
      %p50 = por %p48, %p49
      %p51 = scmp.ne.s32.totalorder %s40, %s43
      %p52 = scmp.eq.s32.totalorder %s23, 1
      %p53 = por %p51, %p52
      %p54 = scmp.ne.s32.totalorder %s43, %s44
      %p55 = scmp.eq.s32.totalorder %s23, 0
      %p56 = por %p54, %p55
      %p57 = scmp.ne.s32.totalorder %s43, %s44
      %p58 = scmp.eq.s32.totalorder %s24, 1
      %p59 = por %p57, %p58
      %p61 = scmp.ne.s32.totalorder %s44, %s60
      %p62 = scmp.eq.s32.totalorder %s24, 0
      %p63 = por %p61, %p62
      %s64 = ssub.s32 %s26, %s33
      %p65 = scmp.eq.s32.totalorder %s64, 0
      %s67 = sadd.s32 %s66, 1
      %s68 = scalar_select %p65, %s66, %s67
      %p71 = pneg %p65
      %p72 = scmp.eq.s32.totalorder %s18, 1
      %p73 = por %p71, %p72
      %p74 = scmp.ne.s32.totalorder %s66, %s69
      %p75 = scmp.eq.s32.totalorder %s18, 0
      %p76 = por %p74, %p75
      %p77 = scmp.ne.s32.totalorder %s66, %s69
      %p78 = scmp.eq.s32.totalorder %s23, 1
      %p79 = por %p77, %p78
      %p80 = scmp.ne.s32.totalorder %s69, %s70
      %p81 = scmp.eq.s32.totalorder %s23, 0
      %p82 = por %p80, %p81
      %p83 = scmp.ne.s32.totalorder %s69, %s70
      %p84 = scmp.eq.s32.totalorder %s24, 1
      %p85 = por %p83, %p84
      %p87 = scmp.ne.s32.totalorder %s70, %s86
      %p88 = scmp.eq.s32.totalorder %s24, 0
      %p89 = por %p87, %p88
      %s90 = ssub.s32 %s26, %s33
      %p91 = scmp.eq.s32.totalorder %s90, 0
      %s93 = sadd.s32 %s92, 1
      %s94 = scalar_select %p91, %s92, %s93
      %p97 = pneg %p91
      %p98 = scmp.eq.s32.totalorder %s18, 1
      %p99 = por %p97, %p98
      %p100 = scmp.ne.s32.totalorder %s92, %s95
      %p101 = scmp.eq.s32.totalorder %s18, 0
      %p102 = por %p100, %p101
      %p103 = scmp.ne.s32.totalorder %s92, %s95
      %p104 = scmp.eq.s32.totalorder %s23, 1
      %p105 = por %p103, %p104
      %p106 = scmp.ne.s32.totalorder %s95, %s96
      %p107 = scmp.eq.s32.totalorder %s23, 0
      %p108 = por %p106, %p107
      %p109 = scmp.ne.s32.totalorder %s95, %s96
      %p110 = scmp.eq.s32.totalorder %s24, 1
      %p111 = por %p109, %p110
      %p113 = scmp.ne.s32.totalorder %s96, %s112
      %p114 = scmp.eq.s32.totalorder %s24, 0
      %p115 = por %p113, %p114
      %s116 = ssub.s32 %s26, %s33
      %p117 = scmp.eq.s32.totalorder %s116, 0
      %s119 = sadd.s32 %s118, 1
      %s120 = scalar_select %p117, %s118, %s119
      %p123 = pneg %p117
      %p124 = scmp.eq.s32.totalorder %s18, 1
      %p125 = por %p123, %p124
      %p126 = scmp.ne.s32.totalorder %s118, %s121
      %p127 = scmp.eq.s32.totalorder %s18, 0
      %p128 = por %p126, %p127
      %p129 = scmp.ne.s32.totalorder %s118, %s121
      %p130 = scmp.eq.s32.totalorder %s23, 1
      %p131 = por %p129, %p130
      %p132 = scmp.ne.s32.totalorder %s121, %s122
      %p133 = scmp.eq.s32.totalorder %s23, 0
      %p134 = por %p132, %p133
      %p135 = scmp.ne.s32.totalorder %s121, %s122
      %p136 = scmp.eq.s32.totalorder %s24, 1
      %p137 = por %p135, %p136
      %p139 = scmp.ne.s32.totalorder %s122, %s138
      %p140 = scmp.eq.s32.totalorder %s24, 0
      %p141 = por %p139, %p140
      %s143 = sadd.s32 %s142, 1
      %p146 = scmp.eq.s32.totalorder %s18, 1
      %p147 = scmp.ne.s32.totalorder %s142, %s144
      %p148 = scmp.eq.s32.totalorder %s18, 0
      %p149 = por %p147, %p148
      %p150 = scmp.ne.s32.totalorder %s142, %s144
      %p151 = scmp.eq.s32.totalorder %s23, 1
      %p152 = por %p150, %p151
      %p153 = scmp.ne.s32.totalorder %s144, %s145
      %p154 = scmp.eq.s32.totalorder %s23, 0
      %p155 = por %p153, %p154
      %p156 = scmp.ne.s32.totalorder %s144, %s145
      %p157 = scmp.eq.s32.totalorder %s24, 1
      %p158 = por %p156, %p157
      %p160 = scmp.ne.s32.totalorder %s145, %s159
      %p161 = scmp.eq.s32.totalorder %s24, 0
      %p162 = por %p160, %p161
      %s163 = ssub.s32 %s25, %s37
      %p164 = scmp.eq.s32.totalorder %s163, 0
      %s166 = sadd.s32 %s165, 1
      %s167 = scalar_select %p164, %s165, %s166
      %p170 = pneg %p164
      %p171 = scmp.eq.s32.totalorder %s18, 1
      %p172 = por %p170, %p171
      %p173 = scmp.ne.s32.totalorder %s165, %s168
      %p174 = scmp.eq.s32.totalorder %s18, 0
      %p175 = por %p173, %p174
      %p176 = scmp.ne.s32.totalorder %s165, %s168
      %p177 = scmp.eq.s32.totalorder %s23, 1
      %p178 = por %p176, %p177
      %p179 = scmp.ne.s32.totalorder %s168, %s169
      %p180 = scmp.eq.s32.totalorder %s23, 0
      %p181 = por %p179, %p180
      %p182 = scmp.ne.s32.totalorder %s168, %s169
      %p183 = scmp.eq.s32.totalorder %s24, 1
      %p184 = por %p182, %p183
      %p186 = scmp.ne.s32.totalorder %s169, %s185
      %p187 = scmp.eq.s32.totalorder %s24, 0
      %p188 = por %p186, %p187
      %p189 = scmp.le.s32.totalorder 1, %s18
      %p190 = scmp.lt.s32.totalorder %s18, 3
      %p191 = pnand %p189, %p190
      %p192 = pneg %p191
      // Predicated region
      $region9: #{tpu_custom_call.1} parent=5 // pred_check
        _
      $region10: #{tpu_custom_call.1} parent=5 // pred_check_branch
        %194 = sbr.rel (%p191) target = $region12
      $region11: #{tpu_custom_call.1} parent=5 // pred_region
        %s195 = ssub.s32 %s18, 1
        // Predicated region
        $region13: #{tpu_custom_call.1} parent=11 // pred_check
          %p196 = pneg %p82
        $region14: #{tpu_custom_call.1} parent=11 // pred_check_branch
          %198 = sbr.rel (%p196) target = $region16
        $region15: #{tpu_custom_call.1} parent=11 // pred_region
          %200 = vsyncadd [#allocation6], 0
          %s201 = smul.addr %s28, 8
          %s202 = scalar_lea.hbm %s1, %s201
          %s203 = sshll.u32 %s202, 4
          %s204 = int_to_ptr.hbm [resolvable:$true] %s203
          %s205 = sshll.u32 [#allocation5], 4
          %s206 = int_to_ptr.vmem [resolvable:$true] %s205
          %211 = dma.hbm_to_vmem [thread:$0]  %s204, 2048, %s206, [#allocation6], 128, 128, 8
        $region16: #{tpu_custom_call.1} parent=11 // pred_fallthru
          _
        // Predicated region
        $region17: #{tpu_custom_call.1} parent=11 // pred_check
          %p212 = pneg %p108
        $region18: #{tpu_custom_call.1} parent=11 // pred_check_branch
          %214 = sbr.rel (%p212) target = $region20
        $region19: #{tpu_custom_call.1} parent=11 // pred_region
          %p215 = scmp.lt.s32.totalorder %s28, 0
          %s216 = scalar_select %p215, %s28, 0
          %s217 = scalar_lea.vmem %s2, %s216
        $region20: #{tpu_custom_call.1} parent=11 // pred_fallthru
          _
        // Predicated region
        $region21: #{tpu_custom_call.1} parent=11 // pred_check
          %p218 = pneg %p134
        $region22: #{tpu_custom_call.1} parent=11 // pred_check_branch
          %220 = sbr.rel (%p218) target = $region24
        $region23: #{tpu_custom_call.1} parent=11 // pred_region
          %s221 = smul.u32 16, %s28
          %223 = vsyncadd [#allocation6], 0
          %s224 = smul.addr %s221, 8
          %s225 = scalar_lea.hbm %s3, %s224
          %s226 = sshll.u32 %s225, 4
          %s227 = int_to_ptr.hbm [resolvable:$true] %s226
          %s228 = sshll.u32 [#allocation7], 4
          %s229 = int_to_ptr.vmem [resolvable:$true] %s228
          %234 = dma.hbm_to_vmem [thread:$0]  %s227, 2048, %s229, [#allocation6], 128, 128, 8
        $region24: #{tpu_custom_call.1} parent=11 // pred_fallthru
          _
        // Predicated region
        $region25: #{tpu_custom_call.1} parent=11 // pred_check
          %p235 = pneg %p155
        $region26: #{tpu_custom_call.1} parent=11 // pred_check_branch
          %237 = sbr.rel (%p235) target = $region28
        $region27: #{tpu_custom_call.1} parent=11 // pred_region
          _
        $region28: #{tpu_custom_call.1} parent=11 // pred_fallthru
          _
      $region12: #{tpu_custom_call.1} parent=5 // pred_fallthru
        _
      %p238 = scmp.lt.s32.totalorder %s18, 2
      // Predicated region
      $region29: #{tpu_custom_call.1} parent=5 // pred_check
        %p239 = pneg %p238
      $region30: #{tpu_custom_call.1} parent=5 // pred_check_branch
        %241 = sbr.rel (%p239) target = $region32
      $region31: #{tpu_custom_call.1} parent=5 // pred_region
        // Predicated region
        $region33: #{tpu_custom_call.1} parent=31 // pred_check
          %p242 = pneg %p50
        $region34: #{tpu_custom_call.1} parent=31 // pred_check_branch
          %244 = sbr.rel (%p242) target = $region36
        $region35: #{tpu_custom_call.1} parent=31 // pred_region
          %s245 = sand.u32 %s40, 1
          %s246 = scalar_lea.sflag [#allocation3], %s245
          %s247 = sand.u32 %s40, 1
          %s248 = smul.addr %s247, 8
          %s249 = scalar_lea.vmem [#allocation2], %s248
          %251 = vsyncadd %s246, 0
          %s252 = smul.addr %s25, 8
          %s253 = scalar_lea.hbm %s0, %s252
          %s255 = sshll.u32 %s253, 4
          %s256 = int_to_ptr.hbm [resolvable:$true] %s255
          %s257 = sshll.u32 %s249, 4
          %s258 = int_to_ptr.vmem [resolvable:$true] %s257
          %260 = dma.hbm_to_vmem [thread:$0]  %s256, 128, %s258, %s246
        $region36: #{tpu_custom_call.1} parent=31 // pred_fallthru
          _
      $region32: #{tpu_custom_call.1} parent=5 // pred_fallthru
        _
      %p261 = scmp.le.s32.totalorder 1, %s18
      %p262 = scmp.lt.s32.totalorder %s18, 3
      %p263 = pnand %p261, %p262
      %p264 = pneg %p263
      // Predicated region
      $region37: #{tpu_custom_call.1} parent=5 // pred_check
        _
      $region38: #{tpu_custom_call.1} parent=5 // pred_check_branch
        %266 = sbr.rel (%p263) target = $region40
      $region39: #{tpu_custom_call.1} parent=5 // pred_region
        %s267 = ssub.s32 %s18, 1
        %s268 = sand.u32 %s43, 1
        %s269 = scalar_lea.sflag [#allocation3], %s268
        %s270 = sand.u32 %s43, 1
        %s271 = smul.addr %s270, 8
        %s272 = scalar_lea.vmem [#allocation2], %s271
        // Predicated region
        $region41: #{tpu_custom_call.1} parent=39 // pred_check
          %p273 = pneg %p56
        $region42: #{tpu_custom_call.1} parent=39 // pred_check_branch
          %275 = sbr.rel (%p273) target = $region44
        $region43: #{tpu_custom_call.1} parent=39 // pred_region
          %277 = dma.done %s269, 128
        $region44: #{tpu_custom_call.1} parent=39 // pred_fallthru
          _
        // Predicated region
        $region45: #{tpu_custom_call.1} parent=39 // pred_check
          %p278 = pneg %p82
        $region46: #{tpu_custom_call.1} parent=39 // pred_check_branch
          %280 = sbr.rel (%p278) target = $region48
        $region47: #{tpu_custom_call.1} parent=39 // pred_region
          %282 = dma.done [#allocation6], 2048
        $region48: #{tpu_custom_call.1} parent=39 // pred_fallthru
          _
        // Predicated region
        $region49: #{tpu_custom_call.1} parent=39 // pred_check
          %p283 = pneg %p134
        $region50: #{tpu_custom_call.1} parent=39 // pred_check_branch
          %285 = sbr.rel (%p283) target = $region52
        $region51: #{tpu_custom_call.1} parent=39 // pred_region
          %287 = dma.done [#allocation6], 2048
        $region52: #{tpu_custom_call.1} parent=39 // pred_fallthru
          _
        %s288 = sand.u32 %s43, 1
        %s289 = scalar_lea.sflag [#allocation3], %s288
        %s290 = sand.u32 %s43, 1
        %s291 = smul.addr %s290, 8
        %s292 = scalar_lea.vmem [#allocation2], %s291
        %p293 = pneg %p56
        %p294 = pneg %p53
        %p295 = pneg %p82
        %p296 = pneg %p79
        %p297 = scmp.lt.s32.totalorder %s28, 0
        %s298 = scalar_select %p297, %s28, 0
        %s299 = scalar_lea.vmem %s2, %s298
        %p300 = pneg %p108
        %p301 = pneg %p105
        %p302 = pneg %p134
        %p303 = pneg %p131
        %p304 = pneg %p155
        %p305 = pneg %p152
        %p306 = pneg %p181
        %p307 = pneg %p178
        %s308 = sand.u32 %s168, 1
        %s309 = scalar_lea.sflag [#allocation4], %s308
        %s310 = sand.u32 %s168, 1
        %s311 = smul.addr %s310, 8
        %s312 = scalar_lea.vmem [#allocation8], %s311
        %p313 = scmp.lt.s32.totalorder %s28, 0
        %s314 = scalar_select %p313, %s28, 0
        %s315 = scalar_lea.vmem %s2, %s314
        %s316 = smul.u32 16, %s28
        %p317 = scmp.eq.s32.totalorder %s28, 0
        // Predicated region
        $region53: #{tpu_custom_call.1} parent=39 // pred_check
          %p318 = pneg %p317
        $region54: #{tpu_custom_call.1} parent=39 // pred_check_branch
          %320 = sbr.rel (%p318) target = $region56
        $region55: #{tpu_custom_call.1} parent=39 // pred_region
          %321 = vst [vmem:[%s312] sm:$0xff] 0.0
        $region56: #{tpu_custom_call.1} parent=39 // pred_fallthru
          _
        %v322 = vld [vmem:[%s272] sm:$0xff]
        %v323 = vld [vmem:[#allocation5] sm:$0xff]
        %v324 = vld [vmem:[#allocation5 + $0x8] sm:$0xff]
        %v325 = vld [vmem:[#allocation5 + $0x10] sm:$0xff]
        %v326 = vld [vmem:[#allocation5 + $0x18] sm:$0xff]
        %v327 = vld [vmem:[#allocation5 + $0x20] sm:$0xff]
        %v328 = vld [vmem:[#allocation5 + $0x28] sm:$0xff]
        %v329 = vld [vmem:[#allocation5 + $0x30] sm:$0xff]
        %v330 = vld [vmem:[#allocation5 + $0x38] sm:$0xff]
        %v331 = vld [vmem:[#allocation5 + $0x40] sm:$0xff]
        %v332 = vld [vmem:[#allocation5 + $0x48] sm:$0xff]
        %v333 = vld [vmem:[#allocation5 + $0x50] sm:$0xff]
        %v334 = vld [vmem:[#allocation5 + $0x58] sm:$0xff]
        %v335 = vld [vmem:[#allocation5 + $0x60] sm:$0xff]
        %v336 = vld [vmem:[#allocation5 + $0x68] sm:$0xff]
        %v337 = vld [vmem:[#allocation5 + $0x70] sm:$0xff]
        %v338 = vld [vmem:[#allocation5 + $0x78] sm:$0xff]
        %v339 = vld [vmem:[%s315] sm:$0x1]
        %v341 = vperm.slane %v339, 0
        %343 = vmatpush.msra.mxu0 %v338
        %344 = vmatpush.msra.mxu0 %v337
        %345 = vmatpush.msra.mxu0 %v336
        %346 = vmatpush.msra.mxu0 %v335
        %347 = vmatpush.msra.mxu0 %v334
        %348 = vmatpush.msra.mxu0 %v333
        %349 = vmatpush.msra.mxu0 %v332
        %350 = vmatpush.msra.mxu0 %v331
        %351 = vmatpush.msra.mxu0 %v330
        %352 = vmatpush.msra.mxu0 %v329
        %353 = vmatpush.msra.mxu0 %v328
        %354 = vmatpush.msra.mxu0 %v327
        %355 = vmatpush.msra.mxu0 %v326
        %356 = vmatpush.msra.mxu0 %v325
        %357 = vmatpush.msra.mxu0 %v324
        %358 = vmatpush.msra.mxu0 %v323
        %359 = vmatmul.f32.gmra.mxu0 %v322
        %v360 = vpop.f32.mrf.mxu0
        %v361 = vadd.f32 %v341, %v360
        %362 = vdwg.mxu0
        %v363 = vmul.f32 %v361, 0.5
        %v364 = vmul.f32 %v361, 0.7978846
        %v365 = vmul.f32 %v361, 0.044715
        %v366 = vmul.f32 %v365, %v361
        %v367 = vadd.f32 %v366, 1.0
        %v368 = vmul.f32 %v364, %v367
        %v369 = vtanh.pop %v368
        %v370 = vadd.f32 %v369, 1.0
        %v371 = vmul.f32 %v363, %v370
        %v372 = vld [vmem:[%s312] sm:$0xff]
        %v373 = vld [vmem:[#allocation7] sm:$0xff]
        %v374 = vld [vmem:[#allocation7 + $0x8] sm:$0xff]
        %v375 = vld [vmem:[#allocation7 + $0x10] sm:$0xff]
        %v376 = vld [vmem:[#allocation7 + $0x18] sm:$0xff]
        %v377 = vld [vmem:[#allocation7 + $0x20] sm:$0xff]
        %v378 = vld [vmem:[#allocation7 + $0x28] sm:$0xff]
        %v379 = vld [vmem:[#allocation7 + $0x30] sm:$0xff]
        %v380 = vld [vmem:[#allocation7 + $0x38] sm:$0xff]
        %v381 = vld [vmem:[#allocation7 + $0x40] sm:$0xff]
        %v382 = vld [vmem:[#allocation7 + $0x48] sm:$0xff]
        %v383 = vld [vmem:[#allocation7 + $0x50] sm:$0xff]
        %v384 = vld [vmem:[#allocation7 + $0x58] sm:$0xff]
        %v385 = vld [vmem:[#allocation7 + $0x60] sm:$0xff]
        %v386 = vld [vmem:[#allocation7 + $0x68] sm:$0xff]
        %v387 = vld [vmem:[#allocation7 + $0x70] sm:$0xff]
        %v388 = vld [vmem:[#allocation7 + $0x78] sm:$0xff]
        %389 = vmatpush.msra.mxu0 %v388
        %390 = vmatpush.msra.mxu0 %v387
        %391 = vmatpush.msra.mxu0 %v386
        %392 = vmatpush.msra.mxu0 %v385
        %393 = vmatpush.msra.mxu0 %v384
        %394 = vmatpush.msra.mxu0 %v383
        %395 = vmatpush.msra.mxu0 %v382
        %396 = vmatpush.msra.mxu0 %v381
        %397 = vmatpush.msra.mxu0 %v380
        %398 = vmatpush.msra.mxu0 %v379
        %399 = vmatpush.msra.mxu0 %v378
        %400 = vmatpush.msra.mxu0 %v377
        %401 = vmatpush.msra.mxu0 %v376
        %402 = vmatpush.msra.mxu0 %v375
        %403 = vmatpush.msra.mxu0 %v374
        %404 = vmatpush.msra.mxu0 %v373
        %405 = vmatmul.f32.gmra.mxu0 %v371
        %v406 = vpop.f32.mrf.mxu0
        %v407 = vadd.f32 0.0, %v406
        %408 = vdwg.mxu0
        %v409 = vadd.f32 %v372, %v407
        %410 = vst [vmem:[%s312] sm:$0xff] %v409
        // Predicated region
        $region57: #{tpu_custom_call.1} parent=39 // pred_check
          %p411 = pneg %p317
        $region58: #{tpu_custom_call.1} parent=39 // pred_check_branch
          %413 = sbr.rel (%p411) target = $region60
        $region59: #{tpu_custom_call.1} parent=39 // pred_region
          %v414 = vld [vmem:[%s312] sm:$0xff]
          %v415 = vld [vmem:[%s4] sm:$0x1]
          %v417 = vperm.slane %v415, 0
          %v419 = vadd.f32 %v414, %v417
          %420 = vst [vmem:[%s312] sm:$0xff] %v419
        $region60: #{tpu_custom_call.1} parent=39 // pred_fallthru
          _
        %s421 = sand.u32 %s168, 1
        %s422 = scalar_lea.sflag [#allocation4], %s421
        %s423 = sand.u32 %s168, 1
        %s424 = smul.addr %s423, 8
        %s425 = scalar_lea.vmem [#allocation8], %s424
        // Predicated region
        $region61: #{tpu_custom_call.1} parent=39 // pred_check
          %p426 = pneg %p178
        $region62: #{tpu_custom_call.1} parent=39 // pred_check_branch
          %428 = sbr.rel (%p426) target = $region64
        $region63: #{tpu_custom_call.1} parent=39 // pred_region
          %430 = vsyncadd %s422, 0
          %s431 = smul.addr %s27, 8
          %s432 = scalar_lea.hbm %s5, %s431
          %s434 = sshll.u32 %s425, 4
          %s435 = int_to_ptr.vmem [resolvable:$true] %s434
          %s436 = sshll.u32 %s432, 4
          %s437 = int_to_ptr.hbm [resolvable:$true] %s436
          %439 = dma.vmem_to_hbm [thread:$0]  %s435, 128, %s437, %s422
        $region64: #{tpu_custom_call.1} parent=39 // pred_fallthru
          _
      $region40: #{tpu_custom_call.1} parent=5 // pred_fallthru
        _
      %p440 = scmp.le.s32.totalorder 2, %s18
      // Predicated region
      $region65: #{tpu_custom_call.1} parent=5 // pred_check
        %p441 = pneg %p440
      $region66: #{tpu_custom_call.1} parent=5 // pred_check_branch
        %443 = sbr.rel (%p441) target = $region68
      $region67: #{tpu_custom_call.1} parent=5 // pred_region
        %s444 = ssub.s32 %s18, 2
        // Predicated region
        $region69: #{tpu_custom_call.1} parent=67 // pred_check
          %p445 = pneg %p184
        $region70: #{tpu_custom_call.1} parent=67 // pred_check_branch
          %447 = sbr.rel (%p445) target = $region72
        $region71: #{tpu_custom_call.1} parent=67 // pred_region
          %s448 = sand.u32 %s169, 1
          %s449 = scalar_lea.sflag [#allocation4], %s448
          %s450 = sand.u32 %s169, 1
          %s451 = smul.addr %s450, 8
          %s452 = scalar_lea.vmem [#allocation8], %s451
          %454 = dma.done %s449, 128
        $region72: #{tpu_custom_call.1} parent=67 // pred_fallthru
          _
      $region68: #{tpu_custom_call.1} parent=5 // pred_fallthru
        _
    $region6: #{tpu_custom_call.1} parent=1 // loop_footer
      %s22 = sadd.s32 1, %s18
    $region7: #{tpu_custom_call.1} parent=1 // loop_footer_branch
      %17 = sbr.rel target = $region3
    $region8: #{tpu_custom_call.1} parent=1 // loop_exit
      _
    %455 = vsyncpa [#allocation3], 1
    %s456 = scalar_lea.sflag [#allocation3], 1
    %457 = vsyncpa %s456, 1
    %458 = vsyncpa [#allocation6], 1
    %459 = vsyncpa [#allocation4], 1
    %s460 = scalar_lea.sflag [#allocation4], 1
    %461 = vsyncpa %s460, 1

</llo_original>
